<compile_context>
chip_gen: v7x
topology: tpu7x:2x2x1
jax: 0.10.0
libtpu: 0.0.40
codegen_flags: <defaults>
</compile_context>

<pallas_src>
import functools

import jax
import jax.numpy as jnp
from jax.experimental import pallas as pl
from jax.experimental.pallas import tpu as pltpu


def _cdiv(a: int, b: int) -> int:
    return (a + b - 1) // b


def _choose_tile(dim: int, max_tile: int, align: int):
    """Pick (tile, padded_dim).

    tile is a multiple of `align`, <= max(max_tile, align), and divides
    padded_dim exactly (padded_dim >= dim).  Prefers zero/minimal padding,
    tie-broken toward fewer blocks; searches only a few block counts so the
    K/M/N grid never explodes just to avoid a tiny pad.
    """
    units = _cdiv(dim, align)                 # dim in units of `align`
    max_units = max(1, max_tile // align)
    n_min = _cdiv(units, max_units)
    best = None
    for n in range(n_min, min(units, n_min + 8) + 1):
        t = _cdiv(units, n)
        padded = t * n
        key = (padded, n)
        if best is None or key < best[0]:
            best = (key, t * align, padded * align)
        if padded == units:                   # exact division -> no padding
            break
    return best[1], best[2]


@functools.lru_cache(maxsize=None)
def _vmem_limit_bytes() -> int:
    """Per-generation VMEM budget for the pallas_call."""
    try:
        cap = getattr(pltpu.get_tpu_info(), "vmem_capacity_bytes", 64 << 20)
    except Exception:  # pragma: no cover - be conservative if query fails
        cap = 64 << 20
    if cap >= (100 << 20):   # v5e / v6e: 128 MiB physical VMEM
        return 96 << 20
    return 48 << 20          # v7x: 64 MiB per TensorCore -> leave headroom


def _mlp_kernel_f32_out(x_ref, w_ref, b_ref, o_ref):
    """f32 output tile doubles as the accumulator (VMEM-resident across K)."""
    k = pl.program_id(2)

    @pl.when(k == 0)
    def _init():
        o_ref[...] = jnp.zeros_like(o_ref)

    x = x_ref[...]
    if x.dtype != w_ref.dtype:               # trace-time branch (mixed precision)
        x = x.astype(w_ref.dtype)
    o_ref[...] += jnp.dot(x, w_ref[...], preferred_element_type=jnp.float32)

    @pl.when(k == pl.num_programs(2) - 1)
    def _finalize():
        o_ref[...] = jnp.maximum(o_ref[...] + b_ref[...].astype(jnp.float32), 0.0)


def _mlp_kernel_acc(x_ref, w_ref, b_ref, o_ref, acc_ref):
    """f32 scratch accumulator; used when the output dtype is narrower than f32."""
    k = pl.program_id(2)

    @pl.when(k == 0)
    def _init():
        acc_ref[...] = jnp.zeros_like(acc_ref)

    x = x_ref[...]
    if x.dtype != w_ref.dtype:
        x = x.astype(w_ref.dtype)
    acc_ref[...] += jnp.dot(x, w_ref[...], preferred_element_type=jnp.float32)

    @pl.when(k == pl.num_programs(2) - 1)
    def _finalize():
        out = acc_ref[...] + b_ref[...].astype(jnp.float32)
        o_ref[...] = jnp.maximum(out, 0.0).astype(o_ref.dtype)


@functools.partial(
    jax.jit, static_argnames=("out_dtype", "tm_max", "tn_max", "tk_max"))
def mlp_forward(x, w, b, *, out_dtype=None, tm_max=512, tn_max=1024, tk_max=1024):
    """ReLU(x @ w + b).  x: (B, In), w: (In, Out) == fc1.weight.T, b: (Out,)."""
    B, In = x.shape
    K2, Out = w.shape
    assert K2 == In and b.shape == (Out,)
    out_dtype = jnp.dtype(x.dtype if out_dtype is None else out_dtype)

    # Sublane alignment depends on dtype packing (f32: 8, bf16: 16, i8: 32);
    # the lane (last) dim always aligns to 128.
    m_align = max(8, 32 // jnp.dtype(x.dtype).itemsize, 32 // out_dtype.itemsize)
    tm, Mp = _choose_tile(B, tm_max, m_align)
    tk, Kp = _choose_tile(In, tk_max, 128)
    tn, Np = _choose_tile(Out, tn_max, 128)

    # Pad only to the (near-minimal) tile-aligned sizes.  Zero K-padding
    # contributes nothing to the dot; padded rows/cols are sliced off below.
    if (Mp, Kp) != (B, In):
        x = jnp.pad(x, ((0, Mp - B), (0, Kp - In)))
    if (Kp, Np) != (In, Out):
        w = jnp.pad(w, ((0, Kp - In), (0, Np - Out)))
    b2 = (jnp.pad(b, (0, Np - Out)) if Np != Out else b).reshape(1, Np)

    gm, gn, gk = Mp // tm, Np // tn, Kp // tk

    # x is streamed once per N panel, w once per M panel, output written once.
    bytes_accessed = (x.dtype.itemsize * Mp * Kp * gn
                      + w.dtype.itemsize * Kp * Np * gm
                      + b2.dtype.itemsize * Np * gm
                      + out_dtype.itemsize * Mp * Np)
    cost = pl.CostEstimate(flops=2 * Mp * Kp * Np, transcendentals=0,
                           bytes_accessed=int(bytes_accessed))

    f32_out = out_dtype == jnp.float32
    kernel = _mlp_kernel_f32_out if f32_out else _mlp_kernel_acc
    scratch = [] if f32_out else [pltpu.VMEM((tm, tn), jnp.float32)]

    out = pl.pallas_call(
        kernel,
        out_shape=jax.ShapeDtypeStruct((Mp, Np), out_dtype),
        grid_spec=pltpu.PrefetchScalarGridSpec(
            num_scalar_prefetch=0,
            grid=(gm, gn, gk),
            in_specs=[
                pl.BlockSpec((tm, tk), lambda i, j, k: (i, k)),   # x tile
                pl.BlockSpec((tk, tn), lambda i, j, k: (k, j)),   # w tile
                pl.BlockSpec((1, tn), lambda i, j, k: (0, j)),    # bias tile
            ],
            out_specs=pl.BlockSpec((tm, tn), lambda i, j, k: (i, j)),
            scratch_shapes=scratch,
        ),
        compiler_params=pltpu.CompilerParams(
            dimension_semantics=("parallel", "parallel", "arbitrary"),
            vmem_limit_bytes=_vmem_limit_bytes(),
        ),
        cost_estimate=cost,
    )(x, w, b2)

    if (Mp, Np) != (B, Out):
        out = out[:B, :Out]
    return out


if __name__ == "__main__":
    key = jax.random.PRNGKey(0)

    def make_inputs(k, batch, input_size, output_size, dtype=jnp.float32):
        kx, kw, kb = jax.random.split(k, 3)
        x = jax.random.normal(kx, (batch, input_size), dtype=dtype)
        bound = 1.0 / (input_size ** 0.5)
        w = jax.random.uniform(kw, (input_size, output_size),
                               minval=-bound, maxval=bound, dtype=dtype)
        b = jax.random.uniform(kb, (output_size,),
                               minval=-bound, maxval=bound, dtype=dtype)
        return x, w, b

    # --- Small shape consistent with MLP(input_size, output_size) ---
    x, w, b = make_inputs(key, batch=8, input_size=32, output_size=128)
    out = mlp_forward(x, w, b)
    jax.block_until_ready(out)
    ref = jnp.maximum(x @ w + b, 0.0)
    assert out.shape == ref.shape and out.dtype == ref.dtype
    assert jnp.allclose(out, ref, atol=1e-5, rtol=1e-5)

    # --- Non-tile-power shape: new tiling gives zero padding (384/640/384) ---
    x2, w2, b2 = make_inputs(jax.random.PRNGKey(1),
                             batch=384, input_size=640, output_size=384)
    out2 = mlp_forward(x2, w2, b2)
    jax.block_until_ready(out2)
    ref2 = jnp.maximum(x2 @ w2 + b2, 0.0)
    assert jnp.allclose(out2, ref2, atol=1e-4, rtol=1e-4)

    # --- bf16 weight-streaming: weights persisted in bf16 OUTSIDE the jitted
    # forward (cast once), x cast per-tile in-kernel, f32 accumulate, bf16 out.
    w2_bf16 = w2.astype(jnp.bfloat16)
    out3 = mlp_forward(x2, w2_bf16, b2, out_dtype=jnp.bfloat16)
    jax.block_until_ready(out3)
    assert out3.dtype == jnp.bfloat16
    assert jnp.allclose(out3.astype(jnp.float32), ref2, atol=5e-2, rtol=5e-2)

    print("KERNEL_OK")
</pallas_src>

<mosaic_0001>
module attributes {stable_mosaic.version = 11 : i64} {
  func.func @_mlp_kernel_f32_out(%arg0: i32, %arg1: i32, %arg2: i32, %arg3: memref<8x128xf32, #tpu.memory_space<vmem>>, %arg4: memref<128x128xf32, #tpu.memory_space<vmem>>, %arg5: memref<1x128xf32, #tpu.memory_space<vmem>>, %arg6: memref<8x128xf32, #tpu.memory_space<vmem>>) attributes {dimension_semantics = [#tpu.dimension_semantics<parallel>, #tpu.dimension_semantics<parallel>, #tpu.dimension_semantics<arbitrary>], iteration_bounds = array<i64: 1, 1, 1>, scalar_prefetch = 0 : i64, scratch_operands = 0 : i64, tpu.core_type = #tpu.core_type<tc>, window_params = [{transform_indices = @transform_0, window_bounds = array<i64: 8, 128>}, {transform_indices = @transform_1, window_bounds = array<i64: 128, 128>}, {transform_indices = @transform_2, window_bounds = array<i64: 1, 128>}, {transform_indices = @transform_3, window_bounds = array<i64: 8, 128>}]} {
    %c0_i32 = arith.constant 0 : i32
    %0 = arith.cmpi eq, %arg2, %c0_i32 : i32
    %1 = arith.extui %0 : i1 to i32
    %c0_i32_0 = arith.constant 0 : i32
    %2 = arith.cmpi ne, %1, %c0_i32_0 : i32
    scf.if %2 {
      %cst_10 = arith.constant 0.000000e+00 : f32
      %12 = vector.broadcast %cst_10 : f32 to vector<8x128xf32>
      %c0_11 = arith.constant 0 : index
      %c0_12 = arith.constant 0 : index
      %13 = vector.load %arg6[%c0_11, %c0_12] : memref<8x128xf32, #tpu.memory_space<vmem>>, vector<8x128xf32>
      tpu.vector_store %arg6[%c0_11, %c0_12], %12 {strides = array<i32>} : memref<8x128xf32, #tpu.memory_space<vmem>>, vector<8x128xf32>,
    } else {
    }
    %c0 = arith.constant 0 : index
    %c0_1 = arith.constant 0 : index
    %3 = vector.load %arg3[%c0, %c0_1] : memref<8x128xf32, #tpu.memory_space<vmem>>, vector<8x128xf32>
    %c0_2 = arith.constant 0 : index
    %c0_3 = arith.constant 0 : index
    %4 = vector.load %arg6[%c0_2, %c0_3] : memref<8x128xf32, #tpu.memory_space<vmem>>, vector<8x128xf32>
    %c0_4 = arith.constant 0 : index
    %c0_5 = arith.constant 0 : index
    %5 = vector.load %arg4[%c0_4, %c0_5] : memref<128x128xf32, #tpu.memory_space<vmem>>, vector<128x128xf32>
    %cst = arith.constant dense<0.000000e+00> : vector<8x128xf32>
    %6 = tpu.matmul %3, %5, %cst {dimension_numbers = #tpu.dot_dimension_numbers<[1], [0], [0], [1], [0, 0, 1, 1], [], []>} : vector<8x128xf32>, vector<128x128xf32>, vector<8x128xf32> -> vector<8x128xf32>
    %7 = arith.addf %4, %6 : vector<8x128xf32>
    %c0_6 = arith.constant 0 : index
    %c0_7 = arith.constant 0 : index
    %8 = vector.load %arg6[%c0_6, %c0_7] : memref<8x128xf32, #tpu.memory_space<vmem>>, vector<8x128xf32>
    tpu.vector_store %arg6[%c0_6, %c0_7], %7 {strides = array<i32>} : memref<8x128xf32, #tpu.memory_space<vmem>>, vector<8x128xf32>,
    %c0_i32_8 = arith.constant 0 : i32
    %9 = arith.cmpi eq, %arg2, %c0_i32_8 : i32
    %10 = arith.extui %9 : i1 to i32
    %c0_i32_9 = arith.constant 0 : i32
    %11 = arith.cmpi ne, %10, %c0_i32_9 : i32
    scf.if %11 {
      %c0_10 = arith.constant 0 : index
      %c0_11 = arith.constant 0 : index
      %12 = vector.load %arg6[%c0_10, %c0_11] : memref<8x128xf32, #tpu.memory_space<vmem>>, vector<8x128xf32>
      %c0_12 = arith.constant 0 : index
      %c0_13 = arith.constant 0 : index
      %13 = vector.load %arg5[%c0_12, %c0_13] : memref<1x128xf32, #tpu.memory_space<vmem>>, vector<1x128xf32>
      %14 = vector.broadcast %13 : vector<1x128xf32> to vector<8x128xf32>
      %15 = arith.addf %12, %14 : vector<8x128xf32>
      %cst_14 = arith.constant 0.000000e+00 : f32
      %16 = vector.broadcast %cst_14 : f32 to vector<8x128xf32>
      %17 = arith.maximumf %15, %16 : vector<8x128xf32>
      %c0_15 = arith.constant 0 : index
      %c0_16 = arith.constant 0 : index
      %18 = vector.load %arg6[%c0_15, %c0_16] : memref<8x128xf32, #tpu.memory_space<vmem>>, vector<8x128xf32>
      tpu.vector_store %arg6[%c0_15, %c0_16], %17 {strides = array<i32>} : memref<8x128xf32, #tpu.memory_space<vmem>>, vector<8x128xf32>,
    } else {
    }
    return
  }
  func.func @transform_0(%arg0: i32, %arg1: i32, %arg2: i32) -> (i32, i32) {
    %c0_i32 = arith.constant 0 : i32
    return %arg0, %arg2 : i32, i32
  }
  func.func @transform_1(%arg0: i32, %arg1: i32, %arg2: i32) -> (i32, i32) {
    %c0_i32 = arith.constant 0 : i32
    return %arg2, %arg1 : i32, i32
  }
  func.func @transform_2(%arg0: i32, %arg1: i32, %arg2: i32) -> (i32, i32) {
    %c0_i32 = arith.constant 0 : i32
    %c0_i32_0 = arith.constant 0 : i32
    return %c0_i32, %arg1 : i32, i32
  }
  func.func @transform_3(%arg0: i32, %arg1: i32, %arg2: i32) -> (i32, i32) {
    %c0_i32 = arith.constant 0 : i32
    return %arg0, %arg1 : i32, i32
  }
}

</mosaic_0001>

<llo_original>
// kernel: mlp_forward.1
$region0: #{mlp_forward.1}
  #allocation0 [shape = 'u32[]', space=smem, size = 0x4, offset = 0x4, fixed_abs, tag = 'smem constant byte address 0x4 - core index']
  #allocation1 [shape = 'u32[144,128]{1,0:T(1,128)}', space=vmem, size = 0x12000, scoped, tag = 'internal scratch']
  %s0 = inlined_call_operand.vmem [shape: f32[8,128], index: 0, kind: input, shape index: {}]
  %s1 = inlined_call_operand.vmem [shape: f32[128,128], index: 1, kind: input, shape index: {}]
  %s2 = inlined_call_operand.vmem [shape: f32[1,128], index: 2, kind: input, shape index: {}]
  %s3 = inlined_call_operand.hbm [shape: f32[8,128], index: 3, kind: output, shape index: {}]
  %s4 = sld [smem:[#allocation0]]
  $region30: #{mlp_forward.1} parent=0
    _
  %s6 = ssub.s32 1, %s4
  %s7 = scalar_select 0, %s6, %s4
  $region1: #{mlp_forward.1} parent=0
    #allocation2 [shape = 'u8[4096]{0}', space=vmem, size = 0x1000, scoped, tag = 'output window, operand 0, single buffered']
    #allocation3 [shape = 's32[1]{0}', space=sflag, size = 0x4, scoped, tag = 'scoped memory for mlp_forward.1']
    %8 = vsyncpa [#allocation3], 0
    // Predicated region
    $region2: #{mlp_forward.1} parent=1 // pred_check
      _
    $region3: #{mlp_forward.1} parent=1 // pred_check_branch
      %10 = sbr.rel (0) target = $region5
    $region4: #{mlp_forward.1} parent=1 // pred_region
      _
    $region5: #{mlp_forward.1} parent=1 // pred_fallthru
      _
    // Predicated region
    $region6: #{mlp_forward.1} parent=1 // pred_check
      _
    $region7: #{mlp_forward.1} parent=1 // pred_check_branch
      %12 = sbr.rel (0) target = $region9
    $region8: #{mlp_forward.1} parent=1 // pred_region
      _
    $region9: #{mlp_forward.1} parent=1 // pred_fallthru
      _
    // Predicated region
    $region10: #{mlp_forward.1} parent=1 // pred_check
      _
    $region11: #{mlp_forward.1} parent=1 // pred_check_branch
      %14 = sbr.rel (0) target = $region13
    $region12: #{mlp_forward.1} parent=1 // pred_region
      _
    $region13: #{mlp_forward.1} parent=1 // pred_fallthru
      _
    %p15 = scmp.eq.s32.totalorder 0, 0
    // Predicated region
    $region14: #{mlp_forward.1} parent=1 // pred_check
      %p16 = pneg %p15
    $region15: #{mlp_forward.1} parent=1 // pred_check_branch
      %18 = sbr.rel (%p16) target = $region17
    $region16: #{mlp_forward.1} parent=1 // pred_region
      %19 = vst [vmem:[#allocation2] sm:$0xff] 0.0
    $region17: #{mlp_forward.1} parent=1 // pred_fallthru
      _
    %v20 = vld [vmem:[%s0] sm:$0xff]
    %v21 = vld [vmem:[#allocation2] sm:$0xff]
    %v22 = vld [vmem:[%s1] sm:$0xff]
    %v23 = vld [vmem:[%s1 + $0x8] sm:$0xff]
    %v24 = vld [vmem:[%s1 + $0x10] sm:$0xff]
    %v25 = vld [vmem:[%s1 + $0x18] sm:$0xff]
    %v26 = vld [vmem:[%s1 + $0x20] sm:$0xff]
    %v27 = vld [vmem:[%s1 + $0x28] sm:$0xff]
    %v28 = vld [vmem:[%s1 + $0x30] sm:$0xff]
    %v29 = vld [vmem:[%s1 + $0x38] sm:$0xff]
    %v30 = vld [vmem:[%s1 + $0x40] sm:$0xff]
    %v31 = vld [vmem:[%s1 + $0x48] sm:$0xff]
    %v32 = vld [vmem:[%s1 + $0x50] sm:$0xff]
    %v33 = vld [vmem:[%s1 + $0x58] sm:$0xff]
    %v34 = vld [vmem:[%s1 + $0x60] sm:$0xff]
    %v35 = vld [vmem:[%s1 + $0x68] sm:$0xff]
    %v36 = vld [vmem:[%s1 + $0x70] sm:$0xff]
    %v37 = vld [vmem:[%s1 + $0x78] sm:$0xff]
    %38 = vmatprep.subr.mxu0 0.0
    %39 = vmatpush1.msra.mxu0 %v22
    %40 = vmatprep.subr.mxu0 0.0
    %41 = vmatpush1.msra.mxu0 %v23
    %42 = vmatprep.subr.mxu0 0.0
    %43 = vmatpush1.msra.mxu0 %v24
    %44 = vmatprep.subr.mxu0 0.0
    %45 = vmatpush1.msra.mxu0 %v25
    %46 = vmatprep.subr.mxu0 0.0
    %47 = vmatpush1.msra.mxu0 %v26
    %48 = vmatprep.subr.mxu0 0.0
    %49 = vmatpush1.msra.mxu0 %v27
    %50 = vmatprep.subr.mxu0 0.0
    %51 = vmatpush1.msra.mxu0 %v28
    %52 = vmatprep.subr.mxu0 0.0
    %53 = vmatpush1.msra.mxu0 %v29
    %54 = vmatprep.subr.mxu0 0.0
    %55 = vmatpush1.msra.mxu0 %v30
    %56 = vmatprep.subr.mxu0 0.0
    %57 = vmatpush1.msra.mxu0 %v31
    %58 = vmatprep.subr.mxu0 0.0
    %59 = vmatpush1.msra.mxu0 %v32
    %60 = vmatprep.subr.mxu0 0.0
    %61 = vmatpush1.msra.mxu0 %v33
    %62 = vmatprep.subr.mxu0 0.0
    %63 = vmatpush1.msra.mxu0 %v34
    %64 = vmatprep.subr.mxu0 0.0
    %65 = vmatpush1.msra.mxu0 %v35
    %66 = vmatprep.subr.mxu0 0.0
    %67 = vmatpush1.msra.mxu0 %v36
    %68 = vmatprep.subr.mxu0 0.0
    %69 = vmatpush1.msra.mxu0 %v37
    %70 = vmatprep.subr.mxu0 0.0
    %71 = vmatpush1.msra.mxu0 0.0
    %72 = vmatprep.subr.mxu0 0.0
    %73 = vmatpush1.msra.mxu0 0.0
    %74 = vmatprep.subr.mxu0 0.0
    %75 = vmatpush1.msra.mxu0 0.0
    %76 = vmatprep.subr.mxu0 0.0
    %77 = vmatpush1.msra.mxu0 0.0
    %78 = vmatprep.subr.mxu0 0.0
    %79 = vmatpush1.msra.mxu0 0.0
    %80 = vmatprep.subr.mxu0 0.0
    %81 = vmatpush1.msra.mxu0 0.0
    %82 = vmatprep.subr.mxu0 0.0
    %83 = vmatpush1.msra.mxu0 0.0
    %84 = vmatprep.subr.mxu0 0.0
    %85 = vmatpush1.msra.mxu0 0.0
    %86 = vmatprep.subr.mxu0 0.0
    %87 = vmatpush1.msra.mxu0 0.0
    %88 = vmatprep.subr.mxu0 0.0
    %89 = vmatpush1.msra.mxu0 0.0
    %90 = vmatprep.subr.mxu0 0.0
    %91 = vmatpush1.msra.mxu0 0.0
    %92 = vmatprep.subr.mxu0 0.0
    %93 = vmatpush1.msra.mxu0 0.0
    %94 = vmatprep.subr.mxu0 0.0
    %95 = vmatpush1.msra.mxu0 0.0
    %96 = vmatprep.subr.mxu0 0.0
    %97 = vmatpush1.msra.mxu0 0.0
    %98 = vmatprep.subr.mxu0 0.0
    %99 = vmatpush1.msra.mxu0 0.0
    %100 = vmatprep.subr.mxu0 0.0
    %101 = vmatpush1.msra.mxu0 0.0
    %102 = vmatprep.mubr.f32.mxu0 0.0
    %103 = vmatmul.mubr.f32.gmra.mrb[0].mxu0 %v20
    %v104 = vpop.f32.mrb[0].mxu0
    %v105 = vadd.f32 0.0, %v104
    %v106 = vpop.f32.mrb[0].mxu0
    %107 = vdwg.mxu0
    %v108 = vadd.f32 %v21, %v105
    %109 = vst [vmem:[#allocation2] sm:$0xff] %v108
    // Predicated region
    $region18: #{mlp_forward.1} parent=1 // pred_check
      %p110 = pneg %p15
    $region19: #{mlp_forward.1} parent=1 // pred_check_branch
      %112 = sbr.rel (%p110) target = $region21
    $region20: #{mlp_forward.1} parent=1 // pred_region
      %v113 = vld [vmem:[#allocation2] sm:$0xff]
      %v114 = vld [vmem:[%s2] sm:$0x1]
      %v116 = vlaneseq
      %v117 = vshrl.u32 %v116, 7
      %v118 = vsub.s32 0, %v117
      %v119 = vrot.slane %v114, %v118
      %v121 = vadd.f32 %v113, %v119
      %v122 = vmax.f32 %v121, 0.0
      %123 = vst [vmem:[#allocation2] sm:$0xff] %v122
    $region21: #{mlp_forward.1} parent=1 // pred_fallthru
      _
    // Predicated region
    $region22: #{mlp_forward.1} parent=1 // pred_check
      _
    $region23: #{mlp_forward.1} parent=1 // pred_check_branch
      %125 = sbr.rel (0) target = $region25
    $region24: #{mlp_forward.1} parent=1 // pred_region
      %s127 = ssub.s32 128, 128
      %128 = vsyncadd [#allocation3], %s127
      %s130 = sshll.u32 [#allocation2], 4
      %s131 = int_to_ptr.vmem [resolvable:$true] %s130
      %133 = dma.vmem_to_hbm [thread:$0]  %s131, 128, %s3, [#allocation3]
    $region25: #{mlp_forward.1} parent=1 // pred_fallthru
      _
    // Predicated region
    $region26: #{mlp_forward.1} parent=1 // pred_check
      _
    $region27: #{mlp_forward.1} parent=1 // pred_check_branch
      %135 = sbr.rel (0) target = $region29
    $region28: #{mlp_forward.1} parent=1 // pred_region
      %136 = dma.done [#allocation3], 128
    $region29: #{mlp_forward.1} parent=1 // pred_fallthru
      _
    %137 = vsyncpa [#allocation3], 1

</llo_original>
